<compile_context>
chip_gen: v5e
topology: v5e:2x2
jax: 0.10.0
libtpu: 0.0.40
codegen_flags: <defaults>
</compile_context>

<pallas_src>
import jax
import jax.numpy as jnp
from jax.experimental import pallas as pl
from jax.experimental.pallas import tpu as pltpu

INPUT_DIM = 13
INNER_DIM = 256
TARGET_CLASS_DIM = 24


def mlp_kernel(x_ref, w1_ref, b1_ref, w2_ref, b2_ref, w3_ref, b3_ref, o_ref):
    # Hoisted single reads of the small f32 operands for this grid step.
    b1 = b1_ref[...]          # (1, 256)
    b2 = b2_ref[...]          # (1, 24)
    b3 = b3_ref[...]          # (1, 1)
    w3_row = w3_ref[...]      # (1, 24) — layer-3 weights as a row vector

    # Layer 1: Linear(13 -> 256) + ReLU   (MXU, f32 accumulation)
    h1 = jnp.dot(x_ref[...], w1_ref[...], preferred_element_type=jnp.float32)
    h1 = jnp.maximum(h1 + b1, 0.0)

    # Layer 2: Linear(256 -> 24) + ReLU   (MXU, f32 accumulation)
    h2 = jnp.dot(h1.astype(w2_ref.dtype), w2_ref[...],
                 preferred_element_type=jnp.float32)
    h2 = jnp.maximum(h2 + b2, 0.0)

    # Layer 3: Linear(24 -> 1) as a VPU broadcast-multiply + cross-lane (XLU) reduce.
    # Relayout the (tile_b,) result to the lane-dense (1, tile_b) output block so the
    # store is unmasked and the HBM writeback DMA is dense (biggest non-MXU lever).
    out = jnp.sum(h2 * w3_row, axis=-1)              # (tile_b,)
    out = out.reshape(1, -1) + b3                    # (1, tile_b)
    o_ref[...] = out.astype(o_ref.dtype)


def neural_network_forward(x, params, *, tile_b=8192, use_bf16=True):
    """x: (B, 13) float32. params: w1 (13,256), b1 (1,256), w2 (256,24), b2 (1,24),
    w3 (24,1), b3 (1,1).  Returns (B, 1) float32.

    tile_b:  batch rows per grid step (sweep 4096-8192 f32, up to 16384 bf16).
    use_bf16: cast x / w1 / w2 to bf16 for the MXU (f32 accumulation kept).
    """
    B = x.shape[0]
    w1, b1, w2, b2, w3, b3 = (params[k] for k in ("w1", "b1", "w2", "b2", "w3", "b3"))
    w3_row = jnp.reshape(w3, (1, TARGET_CLASS_DIM))  # (24,1) -> (1,24) for lane reduce

    # bf16 packs 2 rows per sublane -> batch-tile rows must be a multiple of 16.
    row_align = 16 if use_bf16 else 8
    round_up = lambda v, m: -(-v // m) * m

    tile_b = max(row_align, round_up(int(tile_b), row_align))
    tile_b = min(tile_b, round_up(B, row_align))
    # v7x megacore: if the whole batch fits in one tile, split it so the "parallel"
    # grid axis has >= 2 steps and both TensorCores get work.
    if pl.cdiv(B, tile_b) == 1 and tile_b >= 2 * row_align:
        tile_b = round_up(tile_b // 2, row_align)
    num_tiles = pl.cdiv(B, tile_b)
    b_total = num_tiles * tile_b

    compute_dtype = jnp.bfloat16 if use_bf16 else jnp.float32
    # No jnp.pad: Pallas pads the ragged last x block; those rows only feed output
    # lanes >= B which are sliced off below (nothing reduces across batch rows).
    x_in = x.astype(compute_dtype)
    w1_in = w1.astype(compute_dtype)
    w2_in = w2.astype(compute_dtype)
    # Biases and the layer-3 row stay f32 (VPU/XLU path; v5e VPU has no bf16).

    const2d = lambda arr: pl.BlockSpec(arr.shape, lambda i: (0, 0))

    flops = 2 * b_total * (INPUT_DIM * INNER_DIM
                           + INNER_DIM * TARGET_CLASS_DIM
                           + TARGET_CLASS_DIM)
    bytes_accessed = (
        B * INPUT_DIM * x_in.dtype.itemsize          # x read
        + b_total * 4                                # output write
        + w1_in.size * w1_in.dtype.itemsize
        + w2_in.size * w2_in.dtype.itemsize
        + (b1.size + b2.size + w3_row.size + b3.size) * 4
    )

    out = pl.pallas_call(
        mlp_kernel,
        out_shape=jax.ShapeDtypeStruct((num_tiles, tile_b), jnp.float32),
        grid_spec=pltpu.PrefetchScalarGridSpec(
            num_scalar_prefetch=0,
            grid=(num_tiles,),
            in_specs=[
                pl.BlockSpec((tile_b, INPUT_DIM), lambda i: (i, 0)),   # x tile
                const2d(w1_in), const2d(b1),                           # layer 1
                const2d(w2_in), const2d(b2),                           # layer 2
                const2d(w3_row), const2d(b3),                          # layer 3
            ],
            out_specs=pl.BlockSpec((1, tile_b), lambda i: (i, 0)),      # lane-dense slab
        ),
        compiler_params=pltpu.CompilerParams(
            dimension_semantics=("parallel",),       # shard batch tiles across TCs (v7x)
            vmem_limit_bytes=48 * 1024 * 1024,       # safe on v7x; raise on v5e/v6e sweeps
        ),
        cost_estimate=pl.CostEstimate(
            flops=flops, transcendentals=0, bytes_accessed=bytes_accessed),
    )(x_in, w1_in, b1, w2_in, b2, w3_row, b3)

    # (num_tiles, tile_b) row-major is batch order; drop the ragged tail rows.
    return out.reshape(-1)[:B, None]


def init_params(key):
    """Deterministic init mimicking torch.nn.Linear default (U[-1/sqrt(fan_in), 1/sqrt(fan_in)])."""
    def linear_init(k, fan_in, fan_out):
        kw, kb = jax.random.split(k)
        bound = 1.0 / jnp.sqrt(fan_in)
        w = jax.random.uniform(kw, (fan_in, fan_out), jnp.float32, -bound, bound)
        b = jax.random.uniform(kb, (1, fan_out), jnp.float32, -bound, bound)
        return w, b

    k1, k2, k3 = jax.random.split(key, 3)
    w1, b1 = linear_init(k1, INPUT_DIM, INNER_DIM)
    w2, b2 = linear_init(k2, INNER_DIM, TARGET_CLASS_DIM)
    w3, b3 = linear_init(k3, TARGET_CLASS_DIM, 1)
    return {"w1": w1, "b1": b1, "w2": w2, "b2": b2, "w3": w3, "b3": b3}


def reference_forward(x, p, compute_dtype=jnp.float32):
    """Pure-JAX reference matching the kernel's operand dtypes (f32 accumulation)."""
    h1 = jnp.dot(x.astype(compute_dtype), p["w1"].astype(compute_dtype),
                 preferred_element_type=jnp.float32)
    h1 = jnp.maximum(h1 + p["b1"], 0.0)
    h2 = jnp.dot(h1.astype(compute_dtype), p["w2"].astype(compute_dtype),
                 preferred_element_type=jnp.float32)
    h2 = jnp.maximum(h2 + p["b2"], 0.0)
    return h2 @ p["w3"] + p["b3"]


if __name__ == "__main__":
    key = jax.random.PRNGKey(0)
    kx, kp = jax.random.split(key)
    params = init_params(kp)

    # 1) Small batch, f32 path, single (clamped) tile — strict tolerance.
    batch = 8
    x = jax.random.normal(kx, (batch, INPUT_DIM), jnp.float32)
    out = jax.block_until_ready(neural_network_forward(x, params, use_bf16=False))
    ref = reference_forward(x, params)
    assert out.shape == (batch, 1), out.shape
    assert jnp.allclose(out, ref, atol=1e-5, rtol=1e-5), "mismatch vs reference (f32, small batch)"

    # 2) Non-multiple-of-tile batch, f32, multi-step grid + ragged last block.
    batch2 = 300
    x2 = jax.random.normal(kx, (batch2, INPUT_DIM), jnp.float32)
    out2 = jax.block_until_ready(
        neural_network_forward(x2, params, tile_b=128, use_bf16=False))
    ref2 = reference_forward(x2, params)
    assert out2.shape == (batch2, 1), out2.shape
    assert jnp.allclose(out2, ref2, atol=1e-5, rtol=1e-5), "mismatch vs reference (f32, tiled)"

    # 3) Default bf16 path (megacore split + ragged block), looser tolerance vs bf16 reference.
    out3 = jax.block_until_ready(neural_network_forward(x2, params))
    ref3 = reference_forward(x2, params, compute_dtype=jnp.bfloat16)
    assert out3.shape == (batch2, 1), out3.shape
    assert jnp.allclose(out3, ref3, atol=1e-2, rtol=1e-2), "mismatch vs reference (bf16)"

    print("KERNEL_OK")
</pallas_src>

<mosaic_0001>
module attributes {stable_mosaic.version = 11 : i64} {
  func.func @mlp_kernel(%arg0: i32, %arg1: memref<8x13xf32, #tpu.memory_space<vmem>>, %arg2: memref<13x256xf32, #tpu.memory_space<vmem>>, %arg3: memref<1x256xf32, #tpu.memory_space<vmem>>, %arg4: memref<256x24xf32, #tpu.memory_space<vmem>>, %arg5: memref<1x24xf32, #tpu.memory_space<vmem>>, %arg6: memref<1x24xf32, #tpu.memory_space<vmem>>, %arg7: memref<1x1xf32, #tpu.memory_space<vmem>>, %arg8: memref<1x8xf32, #tpu.memory_space<vmem>>) attributes {dimension_semantics = [#tpu.dimension_semantics<parallel>], iteration_bounds = array<i64: 1>, scalar_prefetch = 0 : i64, scratch_operands = 0 : i64, tpu.core_type = #tpu.core_type<tc>, window_params = [{transform_indices = @transform_0, window_bounds = array<i64: 8, 13>}, {pipeline_mode = #tpu.pipeline_mode<synchronous>, transform_indices = @transform_1, window_bounds = array<i64: 13, 256>}, {pipeline_mode = #tpu.pipeline_mode<synchronous>, transform_indices = @transform_2, window_bounds = array<i64: 1, 256>}, {pipeline_mode = #tpu.pipeline_mode<synchronous>, transform_indices = @transform_3, window_bounds = array<i64: 256, 24>}, {pipeline_mode = #tpu.pipeline_mode<synchronous>, transform_indices = @transform_4, window_bounds = array<i64: 1, 24>}, {pipeline_mode = #tpu.pipeline_mode<synchronous>, transform_indices = @transform_5, window_bounds = array<i64: 1, 24>}, {pipeline_mode = #tpu.pipeline_mode<synchronous>, transform_indices = @transform_6, window_bounds = array<i64: 1, 1>}, {transform_indices = @transform_7, window_bounds = array<i64: 1, 8>}]} {
    %c0 = arith.constant 0 : index
    %c0_0 = arith.constant 0 : index
    %0 = vector.load %arg3[%c0, %c0_0] : memref<1x256xf32, #tpu.memory_space<vmem>>, vector<1x256xf32>
    %c0_1 = arith.constant 0 : index
    %c0_2 = arith.constant 0 : index
    %1 = vector.load %arg5[%c0_1, %c0_2] : memref<1x24xf32, #tpu.memory_space<vmem>>, vector<1x24xf32>
    %c0_3 = arith.constant 0 : index
    %c0_4 = arith.constant 0 : index
    %2 = vector.load %arg7[%c0_3, %c0_4] : memref<1x1xf32, #tpu.memory_space<vmem>>, vector<1x1xf32>
    %c0_5 = arith.constant 0 : index
    %c0_6 = arith.constant 0 : index
    %3 = vector.load %arg6[%c0_5, %c0_6] : memref<1x24xf32, #tpu.memory_space<vmem>>, vector<1x24xf32>
    %c0_7 = arith.constant 0 : index
    %c0_8 = arith.constant 0 : index
    %4 = vector.load %arg1[%c0_7, %c0_8] : memref<8x13xf32, #tpu.memory_space<vmem>>, vector<8x13xf32>
    %c0_9 = arith.constant 0 : index
    %c0_10 = arith.constant 0 : index
    %5 = vector.load %arg2[%c0_9, %c0_10] : memref<13x256xf32, #tpu.memory_space<vmem>>, vector<13x256xf32>
    %cst = arith.constant dense<0.000000e+00> : vector<8x256xf32>
    %6 = tpu.matmul %4, %5, %cst {dimension_numbers = #tpu.dot_dimension_numbers<[1], [0], [0], [1], [0, 0, 1, 1], [], []>} : vector<8x13xf32>, vector<13x256xf32>, vector<8x256xf32> -> vector<8x256xf32>
    %7 = vector.broadcast %0 : vector<1x256xf32> to vector<8x256xf32>
    %8 = arith.addf %6, %7 : vector<8x256xf32>
    %cst_11 = arith.constant 0.000000e+00 : f32
    %9 = vector.broadcast %cst_11 : f32 to vector<8x256xf32>
    %10 = arith.maximumf %8, %9 : vector<8x256xf32>
    %c0_12 = arith.constant 0 : index
    %c0_13 = arith.constant 0 : index
    %11 = vector.load %arg4[%c0_12, %c0_13] : memref<256x24xf32, #tpu.memory_space<vmem>>, vector<256x24xf32>
    %cst_14 = arith.constant dense<0.000000e+00> : vector<8x24xf32>
    %12 = tpu.matmul %10, %11, %cst_14 {dimension_numbers = #tpu.dot_dimension_numbers<[1], [0], [0], [1], [0, 0, 1, 1], [], []>} : vector<8x256xf32>, vector<256x24xf32>, vector<8x24xf32> -> vector<8x24xf32>
    %13 = vector.broadcast %1 : vector<1x24xf32> to vector<8x24xf32>
    %14 = arith.addf %12, %13 : vector<8x24xf32>
    %cst_15 = arith.constant 0.000000e+00 : f32
    %15 = vector.broadcast %cst_15 : f32 to vector<8x24xf32>
    %16 = arith.maximumf %14, %15 : vector<8x24xf32>
    %17 = vector.broadcast %3 : vector<1x24xf32> to vector<8x24xf32>
    %18 = arith.mulf %16, %17 : vector<8x24xf32>
    %cst_16 = arith.constant dense<0.000000e+00> : vector<8xf32>
    %19 = vector.multi_reduction <add>, %18, %cst_16 [1] : vector<8x24xf32> to vector<8xf32>
    %20 = vector.shape_cast %19 : vector<8xf32> to vector<1x8xf32>
    %21 = vector.broadcast %2 : vector<1x1xf32> to vector<1x8xf32>
    %22 = arith.addf %20, %21 : vector<1x8xf32>
    %c0_17 = arith.constant 0 : index
    %c0_18 = arith.constant 0 : index
    %23 = vector.load %arg8[%c0_17, %c0_18] : memref<1x8xf32, #tpu.memory_space<vmem>>, vector<1x8xf32>
    tpu.vector_store %arg8[%c0_17, %c0_18], %22 {strides = array<i32>} : memref<1x8xf32, #tpu.memory_space<vmem>>, vector<1x8xf32>,
    return
  }
  func.func @transform_0(%arg0: i32) -> (i32, i32) {
    %c0_i32 = arith.constant 0 : i32
    %c0_i32_0 = arith.constant 0 : i32
    return %arg0, %c0_i32 : i32, i32
  }
  func.func @transform_1(%arg0: i32) -> (i32, i32) {
    %c0_i32 = arith.constant 0 : i32
    %c0_i32_0 = arith.constant 0 : i32
    %c0_i32_1 = arith.constant 0 : i32
    return %c0_i32, %c0_i32_0 : i32, i32
  }
  func.func @transform_2(%arg0: i32) -> (i32, i32) {
    %c0_i32 = arith.constant 0 : i32
    %c0_i32_0 = arith.constant 0 : i32
    %c0_i32_1 = arith.constant 0 : i32
    return %c0_i32, %c0_i32_0 : i32, i32
  }
  func.func @transform_3(%arg0: i32) -> (i32, i32) {
    %c0_i32 = arith.constant 0 : i32
    %c0_i32_0 = arith.constant 0 : i32
    %c0_i32_1 = arith.constant 0 : i32
    return %c0_i32, %c0_i32_0 : i32, i32
  }
  func.func @transform_4(%arg0: i32) -> (i32, i32) {
    %c0_i32 = arith.constant 0 : i32
    %c0_i32_0 = arith.constant 0 : i32
    %c0_i32_1 = arith.constant 0 : i32
    return %c0_i32, %c0_i32_0 : i32, i32
  }
  func.func @transform_5(%arg0: i32) -> (i32, i32) {
    %c0_i32 = arith.constant 0 : i32
    %c0_i32_0 = arith.constant 0 : i32
    %c0_i32_1 = arith.constant 0 : i32
    return %c0_i32, %c0_i32_0 : i32, i32
  }
  func.func @transform_6(%arg0: i32) -> (i32, i32) {
    %c0_i32 = arith.constant 0 : i32
    %c0_i32_0 = arith.constant 0 : i32
    %c0_i32_1 = arith.constant 0 : i32
    return %c0_i32, %c0_i32_0 : i32, i32
  }
  func.func @transform_7(%arg0: i32) -> (i32, i32) {
    %c0_i32 = arith.constant 0 : i32
    %c0_i32_0 = arith.constant 0 : i32
    return %arg0, %c0_i32 : i32, i32
  }
}

</mosaic_0001>

<llo_original>
// kernel: tpu_custom_call.1
$region0: #{tpu_custom_call.1}
  #allocation0 [shape = 'u32[]', space=smem, size = 0x4, offset = 0x4, fixed_abs, tag = 'smem constant byte address 0x4 - core index']
  #allocation1 [shape = 'u32[72,128]{1,0:T(1,128)}', space=vmem, size = 0x9000, scoped, tag = 'internal scratch']
  #allocation2 [shape = 'f32[1,1]{1,0:T(1,128)S(1)}', space=vmem, size = 0x200, scoped, tag = 'scoped memory for tpu_custom_call.1']
  %s0 = inlined_call_operand.vmem [shape: f32[8,13], index: 0, kind: input, shape index: {}]
  %s1 = inlined_call_operand.vmem [shape: f32[13,256], index: 1, kind: input, shape index: {}]
  %s2 = inlined_call_operand.vmem [shape: f32[1,256], index: 2, kind: input, shape index: {}]
  %s3 = inlined_call_operand.vmem [shape: f32[256,24], index: 3, kind: input, shape index: {}]
  %s4 = inlined_call_operand.vmem [shape: f32[1,24], index: 4, kind: input, shape index: {}]
  %s5 = inlined_call_operand.vmem [shape: f32[1,24], index: 5, kind: input, shape index: {}]
  %s6 = inlined_call_operand.<no memory space> [shape: f32[1,1], index: 6, kind: input, shape index: {}]
  %s7 = inlined_call_operand.hbm [shape: f32[1,8], index: 7, kind: output, shape index: {}]
  %s8 = sld [smem:[#allocation0]]
  $region38: #{tpu_custom_call.1} parent=0
    _
  %s10 = ssub.s32 1, %s8
  %s11 = scalar_select 0, %s10, %s8
  %v12 = vstv %s6
  %13 = vst [vmem:[#allocation2] sm:$0x1] %v12
  $region1: #{tpu_custom_call.1} parent=0
    #allocation3 [shape = 'u8[512]{0}', space=vmem, size = 0x400, scoped, tag = 'output window, operand 0, single buffered']
    #allocation4 [shape = 's32[1]{0}', space=sflag, size = 0x4, scoped, tag = 'scoped memory for tpu_custom_call.1']
    %14 = vsyncpa [#allocation4], 0
    // Predicated region
    $region2: #{tpu_custom_call.1} parent=1 // pred_check
      _
    $region3: #{tpu_custom_call.1} parent=1 // pred_check_branch
      %16 = sbr.rel (0) target = $region5
    $region4: #{tpu_custom_call.1} parent=1 // pred_region
      _
    $region5: #{tpu_custom_call.1} parent=1 // pred_fallthru
      _
    // Predicated region
    $region6: #{tpu_custom_call.1} parent=1 // pred_check
      _
    $region7: #{tpu_custom_call.1} parent=1 // pred_check_branch
      %18 = sbr.rel (0) target = $region9
    $region8: #{tpu_custom_call.1} parent=1 // pred_region
      _
    $region9: #{tpu_custom_call.1} parent=1 // pred_fallthru
      _
    // Predicated region
    $region10: #{tpu_custom_call.1} parent=1 // pred_check
      _
    $region11: #{tpu_custom_call.1} parent=1 // pred_check_branch
      %20 = sbr.rel (0) target = $region13
    $region12: #{tpu_custom_call.1} parent=1 // pred_region
      _
    $region13: #{tpu_custom_call.1} parent=1 // pred_fallthru
      _
    // Predicated region
    $region14: #{tpu_custom_call.1} parent=1 // pred_check
      _
    $region15: #{tpu_custom_call.1} parent=1 // pred_check_branch
      %22 = sbr.rel (0) target = $region17
    $region16: #{tpu_custom_call.1} parent=1 // pred_region
      _
    $region17: #{tpu_custom_call.1} parent=1 // pred_fallthru
      _
    // Predicated region
    $region18: #{tpu_custom_call.1} parent=1 // pred_check
      _
    $region19: #{tpu_custom_call.1} parent=1 // pred_check_branch
      %24 = sbr.rel (0) target = $region21
    $region20: #{tpu_custom_call.1} parent=1 // pred_region
      _
    $region21: #{tpu_custom_call.1} parent=1 // pred_fallthru
      _
    // Predicated region
    $region22: #{tpu_custom_call.1} parent=1 // pred_check
      _
    $region23: #{tpu_custom_call.1} parent=1 // pred_check_branch
      %26 = sbr.rel (0) target = $region25
    $region24: #{tpu_custom_call.1} parent=1 // pred_region
      _
    $region25: #{tpu_custom_call.1} parent=1 // pred_fallthru
      _
    // Predicated region
    $region26: #{tpu_custom_call.1} parent=1 // pred_check
      _
    $region27: #{tpu_custom_call.1} parent=1 // pred_check_branch
      %28 = sbr.rel (0) target = $region29
    $region28: #{tpu_custom_call.1} parent=1 // pred_region
      _
    $region29: #{tpu_custom_call.1} parent=1 // pred_fallthru
      _
    %v29 = vld [vmem:[%s2] sm:$0x3]
    %v30 = vld [vmem:[%s4] sm:$0x1]
    %v31 = vld [vmem:[#allocation2] sm:$0x1]
    %v32 = vld [vmem:[%s5] sm:$0x1]
    %v33 = vld [vmem:[%s0] sm:$0xff]
    %v34 = vld [vmem:[%s1] sm:$0xff]
    %v35 = vld [vmem:[%s1 + $0x8] sm:$0xff]
    %v36 = vld [vmem:[%s1 + $0x10] sm:$0x1f]
    %v37 = vld [vmem:[%s1 + $0x18] sm:$0x1f]
    %v39 = vperm.slane %v29, 0
    %v40 = vperm.slane %v29, 1
    %vm43 = vcmask 105472
    %v45 = vsel %vm43, %v33, 0
    %vm47 = vcmask 1044480
    %v49 = vsel %vm47, %v36, 0
    %v52 = vsel %vm47, %v37, 0
    %54 = vmatpush.msra.mxu0 0.0
    %55 = vmatpush.msra.mxu0 0.0
    %56 = vmatpush.msra.mxu0 0.0
    %57 = vmatpush.msra.mxu0 0.0
    %58 = vmatpush.msra.mxu0 0.0
    %59 = vmatpush.msra.mxu0 0.0
    %60 = vmatpush.msra.mxu0 0.0
    %61 = vmatpush.msra.mxu0 0.0
    %62 = vmatpush.msra.mxu0 0.0
    %63 = vmatpush.msra.mxu0 0.0
    %64 = vmatpush.msra.mxu0 0.0
    %65 = vmatpush.msra.mxu0 0.0
    %66 = vmatpush.msra.mxu0 0.0
    %67 = vmatpush.msra.mxu0 0.0
    %68 = vmatpush.msra.mxu0 %v49
    %69 = vmatpush.msra.mxu0 %v34
    %70 = vmatmul.f32.gmra.mxu0 %v45
    %v71 = vpop.f32.mrf.mxu0
    %v72 = vadd.f32 %v39, %v71
    %73 = vdwg.mxu0
    %74 = vmatpush.msra.mxu0 0.0
    %75 = vmatpush.msra.mxu0 0.0
    %76 = vmatpush.msra.mxu0 0.0
    %77 = vmatpush.msra.mxu0 0.0
    %78 = vmatpush.msra.mxu0 0.0
    %79 = vmatpush.msra.mxu0 0.0
    %80 = vmatpush.msra.mxu0 0.0
    %81 = vmatpush.msra.mxu0 0.0
    %82 = vmatpush.msra.mxu0 0.0
    %83 = vmatpush.msra.mxu0 0.0
    %84 = vmatpush.msra.mxu0 0.0
    %85 = vmatpush.msra.mxu0 0.0
    %86 = vmatpush.msra.mxu0 0.0
    %87 = vmatpush.msra.mxu0 0.0
    %88 = vmatpush.msra.mxu0 %v52
    %89 = vmatpush.msra.mxu0 %v35
    %90 = vmatmul.f32.gmra.mxu0 %v45
    %v91 = vpop.f32.mrf.mxu0
    %v92 = vadd.f32 %v40, %v91
    %93 = vdwg.mxu0
    %v94 = vmax.f32 %v72, 0.0
    %v95 = vmax.f32 %v92, 0.0
    %v96 = vld [vmem:[%s3] sm:$0xff]
    %v97 = vld [vmem:[%s3 + $0x8] sm:$0xff]
    %v98 = vld [vmem:[%s3 + $0x10] sm:$0xff]
    %v99 = vld [vmem:[%s3 + $0x18] sm:$0xff]
    %v100 = vld [vmem:[%s3 + $0x20] sm:$0xff]
    %v101 = vld [vmem:[%s3 + $0x28] sm:$0xff]
    %v102 = vld [vmem:[%s3 + $0x30] sm:$0xff]
    %v103 = vld [vmem:[%s3 + $0x38] sm:$0xff]
    %v104 = vld [vmem:[%s3 + $0x40] sm:$0xff]
    %v105 = vld [vmem:[%s3 + $0x48] sm:$0xff]
    %v106 = vld [vmem:[%s3 + $0x50] sm:$0xff]
    %v107 = vld [vmem:[%s3 + $0x58] sm:$0xff]
    %v108 = vld [vmem:[%s3 + $0x60] sm:$0xff]
    %v109 = vld [vmem:[%s3 + $0x68] sm:$0xff]
    %v110 = vld [vmem:[%s3 + $0x70] sm:$0xff]
    %v111 = vld [vmem:[%s3 + $0x78] sm:$0xff]
    %v112 = vld [vmem:[%s3 + $0x80] sm:$0xff]
    %v113 = vld [vmem:[%s3 + $0x88] sm:$0xff]
    %v114 = vld [vmem:[%s3 + $0x90] sm:$0xff]
    %v115 = vld [vmem:[%s3 + $0x98] sm:$0xff]
    %v116 = vld [vmem:[%s3 + $0xa0] sm:$0xff]
    %v117 = vld [vmem:[%s3 + $0xa8] sm:$0xff]
    %v118 = vld [vmem:[%s3 + $0xb0] sm:$0xff]
    %v119 = vld [vmem:[%s3 + $0xb8] sm:$0xff]
    %v120 = vld [vmem:[%s3 + $0xc0] sm:$0xff]
    %v121 = vld [vmem:[%s3 + $0xc8] sm:$0xff]
    %v122 = vld [vmem:[%s3 + $0xd0] sm:$0xff]
    %v123 = vld [vmem:[%s3 + $0xd8] sm:$0xff]
    %v124 = vld [vmem:[%s3 + $0xe0] sm:$0xff]
    %v125 = vld [vmem:[%s3 + $0xe8] sm:$0xff]
    %v126 = vld [vmem:[%s3 + $0xf0] sm:$0xff]
    %v127 = vld [vmem:[%s3 + $0xf8] sm:$0xff]
    %v129 = vperm.slane %v30, 0
    %131 = vmatpush.msra.mxu0 %v111
    %132 = vmatpush.msra.mxu0 %v110
    %133 = vmatpush.msra.mxu0 %v109
    %134 = vmatpush.msra.mxu0 %v108
    %135 = vmatpush.msra.mxu0 %v107
    %136 = vmatpush.msra.mxu0 %v106
    %137 = vmatpush.msra.mxu0 %v105
    %138 = vmatpush.msra.mxu0 %v104
    %139 = vmatpush.msra.mxu0 %v103
    %140 = vmatpush.msra.mxu0 %v102
    %141 = vmatpush.msra.mxu0 %v101
    %142 = vmatpush.msra.mxu0 %v100
    %143 = vmatpush.msra.mxu0 %v99
    %144 = vmatpush.msra.mxu0 %v98
    %145 = vmatpush.msra.mxu0 %v97
    %146 = vmatpush.msra.mxu0 %v96
    %147 = vmatmul.f32.gmra.mxu0 %v94
    %v148 = vpop.f32.mrf.mxu0
    %v149 = vadd.f32 %v129, %v148
    %150 = vdwg.mxu0
    %151 = vmatpush.msra.mxu0 %v127
    %152 = vmatpush.msra.mxu0 %v126
    %153 = vmatpush.msra.mxu0 %v125
    %154 = vmatpush.msra.mxu0 %v124
    %155 = vmatpush.msra.mxu0 %v123
    %156 = vmatpush.msra.mxu0 %v122
    %157 = vmatpush.msra.mxu0 %v121
    %158 = vmatpush.msra.mxu0 %v120
    %159 = vmatpush.msra.mxu0 %v119
    %160 = vmatpush.msra.mxu0 %v118
    %161 = vmatpush.msra.mxu0 %v117
    %162 = vmatpush.msra.mxu0 %v116
    %163 = vmatpush.msra.mxu0 %v115
    %164 = vmatpush.msra.mxu0 %v114
    %165 = vmatpush.msra.mxu0 %v113
    %166 = vmatpush.msra.mxu0 %v112
    %167 = vmatmul.f32.gmra.mxu0 %v95
    %v168 = vpop.f32.mrf.mxu0
    %v169 = vadd.f32 %v149, %v168
    %170 = vdwg.mxu0
    %v171 = vmax.f32 %v169, 0.0
    %v173 = vperm.slane %v32, 0
    %v175 = vmul.f32 %v171, %v173
    %vm176 = vcmask 195584
    %v177 = vsel %vm176, %v175, 0.0
    %178 = vadd.xlane.f32.xlu0 %v177
    %v179 = vpop.xlane.xlu0 %178
    %181 = vset.pattern.permute.xlu0 0
    %182 = vperm.xlu0 %181, %v31
    %v183 = vpop.permute.xlu0 %182
    %v185 = vperm.slane %v183, 0
    %v186 = vadd.f32 %v179, %v185
    %v188 = vlaneseq
    %v189 = vand.u32 %v188, 127
    %v190 = vperm.slane %v186, %v189
    %vm192 = vcmask 57344
    %193 = vst.msk [vmem:[#allocation3] sm:$0x1] %vm192, %v190
    // Predicated region
    $region30: #{tpu_custom_call.1} parent=1 // pred_check
      _
    $region31: #{tpu_custom_call.1} parent=1 // pred_check_branch
      %195 = sbr.rel (0) target = $region33
    $region32: #{tpu_custom_call.1} parent=1 // pred_region
      %197 = vsyncadd [#allocation4], 0
      %s199 = sshll.u32 [#allocation3], 4
      %s200 = int_to_ptr.vmem [resolvable:$true] %s199
      %s201 = sshll.u32 %s7, 4
      %s202 = int_to_ptr.hbm [resolvable:$true] %s201
      %204 = dma.vmem_to_hbm [thread:$0]  %s200, 16, %s202, [#allocation4]
    $region33: #{tpu_custom_call.1} parent=1 // pred_fallthru
      _
    // Predicated region
    $region34: #{tpu_custom_call.1} parent=1 // pred_check
      _
    $region35: #{tpu_custom_call.1} parent=1 // pred_check_branch
      %206 = sbr.rel (0) target = $region37
    $region36: #{tpu_custom_call.1} parent=1 // pred_region
      %208 = dma.done [#allocation4], 16
    $region37: #{tpu_custom_call.1} parent=1 // pred_fallthru
      _
    %209 = vsyncpa [#allocation4], 1

</llo_original>
